<compile_context>
chip_gen: v5e
topology: v5e:2x2
jax: 0.10.0
libtpu: 0.0.40
codegen_flags: <defaults>
</compile_context>

<pallas_src>
import jax
import jax.numpy as jnp
from jax import lax
from jax.experimental import pallas as pl
from jax.experimental.pallas import tpu as pltpu


def _round_down(n, m):
    return (n // m) * m


def _round_up(n, m):
    return ((n + m - 1) // m) * m


def _pick_tile_budget():
    """(max batch-tile rows, scoped-VMEM limit) per TPU generation.

    TB = 8192  -> ~10 MiB total VMEM (safe everywhere with a 32 MiB limit,
                  incl. v7x's 64 MiB physical / v5e's raised scoped budget).
    TB = 16384 -> ~19 MiB total VMEM, only selected on 128-MiB-VMEM chips.
    """
    tb_max, vmem_limit = 8192, 32 * 1024 * 1024
    try:
        info = pltpu.get_tpu_info()
        vmem_bytes = getattr(info, "vmem_capacity_bytes", 0)
        if vmem_bytes and vmem_bytes >= 100 * 1024 * 1024:   # v5e / v6e
            tb_max, vmem_limit = 16384, 64 * 1024 * 1024
    except Exception:
        pass  # unknown chip / older API: keep the conservative settings
    return tb_max, vmem_limit


def _bpc_kernel(x_ref, w1_ref, b1_ref, w2_ref, o_ref):
    # x_ref:  (TB, F)       streamed batch tile (f32 or bf16)
    # w1_ref: (H,  F)       linear_encoder.weight (resident)
    # b1_ref: (H,  1) f32   linear_encoder.bias as a column (resident)
    # w2_ref: (H,  1) f32   classifier.weight as a column (resident)
    # o_ref:  (1, TB) f32   lane-dense output row for this batch tile
    #
    # Contract W1's F axis against x's F axis so the MXU emits
    # h^T = (H, TB): batch stays on the lane axis, no transposes anywhere.
    h_t = lax.dot_general(
        w1_ref[...], x_ref[...],
        dimension_numbers=(((1,), (1,)), ((), ())),
        preferred_element_type=jnp.float32,
    )                                              # (H, TB) f32 accumulator
    h_t = jnp.maximum(h_t + b1_ref[...], 0.0)      # bias bcast over lanes + ReLU
    # Linear(H -> 1, bias=False): VPU multiply + sublane (XLU) reduce.
    o_ref[...] = jnp.sum(w2_ref[...] * h_t, axis=0, keepdims=True)   # (1, TB)


def binary_pattern_classifier_fwd(x, w1, b1, w2):
    """x: (B, F); w1: (H, F); b1: (H,); w2: (1, H)  ->  (B, 1, 1) float32."""
    B, F = x.shape
    H = w1.shape[0]

    # Keep the O(B) x stream in its native dtype (bf16 stays bf16 -> half the
    # HBM traffic); anything else promotes to f32 for the MXU operands.
    in_dtype = jnp.promote_types(x.dtype, w1.dtype)
    if in_dtype != jnp.bfloat16:
        in_dtype = jnp.float32
    x = x.astype(in_dtype)
    w1 = w1.astype(in_dtype)
    b1c = b1.astype(jnp.float32).reshape(H, 1)   # free reshape
    w2c = w2.astype(jnp.float32).reshape(H, 1)   # (1,H)->(H,1): free (size-1 dim)

    tb_max, vmem_limit = _pick_tile_budget()

    # Batch tile: as large as the VMEM budget allows (amortizes the ~0.35 us
    # per-grid-step pipeline overhead), never larger than the batch, and always
    # legal under the (8, 128) block constraint.  No input padding: the ragged
    # last block is masked by Pallas.
    if B <= 128:
        tb = B                                   # single full-extent block
    else:
        tb = min(tb_max, _round_down(B, 128))    # lane-dense output blocks
        if B >= 2048:
            # v7x megacore: keep at least 2 "parallel" grid steps so both
            # TensorCores get work (no-op once B >> tb_max).
            tb = min(tb, _round_up(pl.cdiv(B, 2), 128))

    grid = (pl.cdiv(B, tb),)

    out_row = pl.pallas_call(
        _bpc_kernel,
        out_shape=jax.ShapeDtypeStruct((1, B), jnp.float32),
        grid=grid,
        in_specs=[
            pl.BlockSpec((tb, F), lambda i: (i, 0)),   # x: streamed per tile
            pl.BlockSpec((H, F), lambda i: (0, 0)),    # w1: resident
            pl.BlockSpec((H, 1), lambda i: (0, 0)),    # b1: resident
            pl.BlockSpec((H, 1), lambda i: (0, 0)),    # w2: resident
        ],
        out_specs=pl.BlockSpec((1, tb), lambda i: (0, i)),   # lane-dense slab
        compiler_params=pltpu.CompilerParams(
            dimension_semantics=("parallel",),   # batch tiles are independent
            vmem_limit_bytes=vmem_limit,
        ),
    )(x, w1, b1c, w2c)

    # (1, B) -> (B, 1, 1)  (the PyTorch unsqueeze(-1)).
    return out_row.reshape(B, 1, 1)


def reference_fwd(x, w1, b1, w2):
    x32 = x.astype(jnp.float32)
    h = jnp.maximum(x32 @ w1.astype(jnp.float32).T + b1.astype(jnp.float32), 0.0)
    return (h @ w2.astype(jnp.float32).T)[..., None]


if __name__ == "__main__":
    # Shapes implied by the module: num_feat=16, dim_hidden=32, small batch=8.
    B, NUM_FEAT, DIM_HIDDEN = 8, 16, 32

    key = jax.random.PRNGKey(0)
    kx, kw1, kb1, kw2 = jax.random.split(key, 4)

    x = jax.random.normal(kx, (B, NUM_FEAT), dtype=jnp.float32)
    # pattern_init_weight is external; use a small deterministic uniform init
    # with matching shapes.
    w1 = jax.random.uniform(kw1, (DIM_HIDDEN, NUM_FEAT), dtype=jnp.float32,
                            minval=-0.5, maxval=0.5)   # linear_encoder.weight
    b1 = jax.random.uniform(kb1, (DIM_HIDDEN,), dtype=jnp.float32,
                            minval=-0.5, maxval=0.5)   # linear_encoder.bias
    w2 = jax.random.uniform(kw2, (1, DIM_HIDDEN), dtype=jnp.float32,
                            minval=-0.5, maxval=0.5)   # classifier.weight

    out = binary_pattern_classifier_fwd(x, w1, b1, w2)
    jax.block_until_ready(out)
    ref = reference_fwd(x, w1, b1, w2)
    assert out.shape == (B, 1, 1), out.shape
    assert jnp.allclose(out, ref, atol=1e-5, rtol=1e-5), "mismatch (small B)"

    # Multi-block grid + ragged (masked) last block path, no wrapper padding.
    B2 = 1030
    x2 = jax.random.normal(jax.random.PRNGKey(1), (B2, NUM_FEAT), dtype=jnp.float32)
    out2 = binary_pattern_classifier_fwd(x2, w1, b1, w2)
    jax.block_until_ready(out2)
    ref2 = reference_fwd(x2, w1, b1, w2)
    assert out2.shape == (B2, 1, 1), out2.shape
    assert jnp.allclose(out2, ref2, atol=1e-5, rtol=1e-5), "mismatch (ragged B)"

    print("KERNEL_OK")
</pallas_src>

<mosaic_0001>
module attributes {stable_mosaic.version = 11 : i64} {
  func.func @_bpc_kernel(%arg0: i32, %arg1: memref<8x16xf32, #tpu.memory_space<vmem>>, %arg2: memref<32x16xf32, #tpu.memory_space<vmem>>, %arg3: memref<32x1xf32, #tpu.memory_space<vmem>>, %arg4: memref<32x1xf32, #tpu.memory_space<vmem>>, %arg5: memref<1x8xf32, #tpu.memory_space<vmem>>) attributes {dimension_semantics = [#tpu.dimension_semantics<parallel>], iteration_bounds = array<i64: 1>, scalar_prefetch = 0 : i64, scratch_operands = 0 : i64, tpu.core_type = #tpu.core_type<tc>, window_params = [{transform_indices = @transform_0, window_bounds = array<i64: 8, 16>}, {pipeline_mode = #tpu.pipeline_mode<synchronous>, transform_indices = @transform_1, window_bounds = array<i64: 32, 16>}, {pipeline_mode = #tpu.pipeline_mode<synchronous>, transform_indices = @transform_2, window_bounds = array<i64: 32, 1>}, {pipeline_mode = #tpu.pipeline_mode<synchronous>, transform_indices = @transform_3, window_bounds = array<i64: 32, 1>}, {transform_indices = @transform_4, window_bounds = array<i64: 1, 8>}]} {
    %c0 = arith.constant 0 : index
    %c0_0 = arith.constant 0 : index
    %0 = vector.load %arg2[%c0, %c0_0] : memref<32x16xf32, #tpu.memory_space<vmem>>, vector<32x16xf32>
    %c0_1 = arith.constant 0 : index
    %c0_2 = arith.constant 0 : index
    %1 = vector.load %arg1[%c0_1, %c0_2] : memref<8x16xf32, #tpu.memory_space<vmem>>, vector<8x16xf32>
    %cst = arith.constant dense<0.000000e+00> : vector<32x8xf32>
    %2 = tpu.matmul %0, %1, %cst {dimension_numbers = #tpu.dot_dimension_numbers<[1], [1], [0], [0], [0, 0, 1, 0], [], []>} : vector<32x16xf32>, vector<8x16xf32>, vector<32x8xf32> -> vector<32x8xf32>
    %c0_3 = arith.constant 0 : index
    %c0_4 = arith.constant 0 : index
    %3 = vector.load %arg3[%c0_3, %c0_4] : memref<32x1xf32, #tpu.memory_space<vmem>>, vector<32x1xf32>
    %4 = vector.broadcast %3 : vector<32x1xf32> to vector<32x8xf32>
    %5 = arith.addf %2, %4 : vector<32x8xf32>
    %cst_5 = arith.constant 0.000000e+00 : f32
    %6 = vector.broadcast %cst_5 : f32 to vector<32x8xf32>
    %7 = arith.maximumf %5, %6 : vector<32x8xf32>
    %c0_6 = arith.constant 0 : index
    %c0_7 = arith.constant 0 : index
    %8 = vector.load %arg4[%c0_6, %c0_7] : memref<32x1xf32, #tpu.memory_space<vmem>>, vector<32x1xf32>
    %9 = vector.broadcast %8 : vector<32x1xf32> to vector<32x8xf32>
    %10 = arith.mulf %9, %7 : vector<32x8xf32>
    %cst_8 = arith.constant dense<0.000000e+00> : vector<8xf32>
    %11 = vector.multi_reduction <add>, %10, %cst_8 [0] : vector<32x8xf32> to vector<8xf32>
    %12 = vector.shape_cast %11 : vector<8xf32> to vector<1x8xf32>
    %c0_9 = arith.constant 0 : index
    %c0_10 = arith.constant 0 : index
    %13 = vector.load %arg5[%c0_9, %c0_10] : memref<1x8xf32, #tpu.memory_space<vmem>>, vector<1x8xf32>
    tpu.vector_store %arg5[%c0_9, %c0_10], %12 {strides = array<i32>} : memref<1x8xf32, #tpu.memory_space<vmem>>, vector<1x8xf32>,
    return
  }
  func.func @transform_0(%arg0: i32) -> (i32, i32) {
    %c0_i32 = arith.constant 0 : i32
    %c0_i32_0 = arith.constant 0 : i32
    return %arg0, %c0_i32 : i32, i32
  }
  func.func @transform_1(%arg0: i32) -> (i32, i32) {
    %c0_i32 = arith.constant 0 : i32
    %c0_i32_0 = arith.constant 0 : i32
    %c0_i32_1 = arith.constant 0 : i32
    return %c0_i32, %c0_i32_0 : i32, i32
  }
  func.func @transform_2(%arg0: i32) -> (i32, i32) {
    %c0_i32 = arith.constant 0 : i32
    %c0_i32_0 = arith.constant 0 : i32
    %c0_i32_1 = arith.constant 0 : i32
    return %c0_i32, %c0_i32_0 : i32, i32
  }
  func.func @transform_3(%arg0: i32) -> (i32, i32) {
    %c0_i32 = arith.constant 0 : i32
    %c0_i32_0 = arith.constant 0 : i32
    %c0_i32_1 = arith.constant 0 : i32
    return %c0_i32, %c0_i32_0 : i32, i32
  }
  func.func @transform_4(%arg0: i32) -> (i32, i32) {
    %c0_i32 = arith.constant 0 : i32
    %c0_i32_0 = arith.constant 0 : i32
    return %c0_i32, %arg0 : i32, i32
  }
}

</mosaic_0001>

<llo_original>
// kernel: tpu_custom_call.1
$region0: #{tpu_custom_call.1}
  #allocation0 [shape = 'u32[]', space=smem, size = 0x4, offset = 0x4, fixed_abs, tag = 'smem constant byte address 0x4 - core index']
  #allocation1 [shape = 'u32[72,128]{1,0:T(1,128)}', space=vmem, size = 0x9000, scoped, tag = 'internal scratch']
  %s0 = inlined_call_operand.vmem [shape: f32[8,16], index: 0, kind: input, shape index: {}]
  %s1 = inlined_call_operand.vmem [shape: f32[32,16], index: 1, kind: input, shape index: {}]
  %s2 = inlined_call_operand.vmem [shape: f32[32,1], index: 2, kind: input, shape index: {}]
  %s3 = inlined_call_operand.vmem [shape: f32[32,1], index: 3, kind: input, shape index: {}]
  %s4 = inlined_call_operand.hbm [shape: f32[1,8], index: 4, kind: output, shape index: {}]
  %s5 = sld [smem:[#allocation0]]
  $region26: #{tpu_custom_call.1} parent=0
    _
  %s7 = ssub.s32 1, %s5
  %s8 = scalar_select 0, %s7, %s5
  $region1: #{tpu_custom_call.1} parent=0
    #allocation2 [shape = 'u8[512]{0}', space=vmem, size = 0x400, scoped, tag = 'output window, operand 0, single buffered']
    #allocation3 [shape = 's32[1]{0}', space=sflag, size = 0x4, scoped, tag = 'scoped memory for tpu_custom_call.1']
    %9 = vsyncpa [#allocation3], 0
    // Predicated region
    $region2: #{tpu_custom_call.1} parent=1 // pred_check
      _
    $region3: #{tpu_custom_call.1} parent=1 // pred_check_branch
      %11 = sbr.rel (0) target = $region5
    $region4: #{tpu_custom_call.1} parent=1 // pred_region
      _
    $region5: #{tpu_custom_call.1} parent=1 // pred_fallthru
      _
    // Predicated region
    $region6: #{tpu_custom_call.1} parent=1 // pred_check
      _
    $region7: #{tpu_custom_call.1} parent=1 // pred_check_branch
      %13 = sbr.rel (0) target = $region9
    $region8: #{tpu_custom_call.1} parent=1 // pred_region
      _
    $region9: #{tpu_custom_call.1} parent=1 // pred_fallthru
      _
    // Predicated region
    $region10: #{tpu_custom_call.1} parent=1 // pred_check
      _
    $region11: #{tpu_custom_call.1} parent=1 // pred_check_branch
      %15 = sbr.rel (0) target = $region13
    $region12: #{tpu_custom_call.1} parent=1 // pred_region
      _
    $region13: #{tpu_custom_call.1} parent=1 // pred_fallthru
      _
    // Predicated region
    $region14: #{tpu_custom_call.1} parent=1 // pred_check
      _
    $region15: #{tpu_custom_call.1} parent=1 // pred_check_branch
      %17 = sbr.rel (0) target = $region17
    $region16: #{tpu_custom_call.1} parent=1 // pred_region
      _
    $region17: #{tpu_custom_call.1} parent=1 // pred_fallthru
      _
    %v18 = vld [vmem:[%s1] sm:$0xff]
    %v19 = vld [vmem:[%s1 + $0x8] sm:$0xff]
    %v20 = vld [vmem:[%s1 + $0x10] sm:$0xff]
    %v21 = vld [vmem:[%s1 + $0x18] sm:$0xff]
    %v22 = vld [vmem:[%s0] sm:$0xff]
    %v23 = vld [vmem:[%s2] sm:$0xff]
    %v24 = vld [vmem:[%s2 + $0x8] sm:$0xff]
    %v25 = vld [vmem:[%s2 + $0x10] sm:$0xff]
    %v26 = vld [vmem:[%s2 + $0x18] sm:$0xff]
    %28 = vset.pattern.permute.xlu0 0
    %29 = vperm.xlu0 %28, %v23
    %v30 = vpop.permute.xlu0 %29
    %33 = vset.pattern.permute.xlu0 0
    %34 = vperm.xlu0 %33, %v24
    %v35 = vpop.permute.xlu0 %34
    %38 = vset.pattern.permute.xlu0 0
    %39 = vperm.xlu0 %38, %v25
    %v40 = vpop.permute.xlu0 %39
    %43 = vset.pattern.permute.xlu0 0
    %44 = vperm.xlu0 %43, %v26
    %v45 = vpop.permute.xlu0 %44
    %vm47 = vcmask 130048
    %v49 = vsel %vm47, %v18, 0
    %v52 = vsel %vm47, %v19, 0
    %v55 = vsel %vm47, %v20, 0
    %v58 = vsel %vm47, %v21, 0
    %v61 = vsel %vm47, %v22, 0
    %63 = vmatpush.xpose.msra.mxu0 0.0
    %64 = vmatpush.xpose.msra.mxu0 0.0
    %65 = vmatpush.xpose.msra.mxu0 0.0
    %66 = vmatpush.xpose.msra.mxu0 0.0
    %67 = vmatpush.xpose.msra.mxu0 0.0
    %68 = vmatpush.xpose.msra.mxu0 0.0
    %69 = vmatpush.xpose.msra.mxu0 0.0
    %70 = vmatpush.xpose.msra.mxu0 0.0
    %71 = vmatpush.xpose.msra.mxu0 0.0
    %72 = vmatpush.xpose.msra.mxu0 0.0
    %73 = vmatpush.xpose.msra.mxu0 0.0
    %74 = vmatpush.xpose.msra.mxu0 0.0
    %75 = vmatpush.xpose.msra.mxu0 0.0
    %76 = vmatpush.xpose.msra.mxu0 0.0
    %77 = vmatpush.xpose.msra.mxu0 0.0
    %78 = vmatpush.xpose.msra.mxu0 %v61
    %79 = vmatmul.f32.gmra.mxu0 %v49
    %v80 = vpop.f32.mrf.mxu0
    %v81 = vadd.f32 %v30, %v80
    %82 = vmatmul.f32.gmra.mxu0 %v52
    %v83 = vpop.f32.mrf.mxu0
    %v84 = vadd.f32 %v35, %v83
    %85 = vmatmul.f32.gmra.mxu0 %v55
    %v86 = vpop.f32.mrf.mxu0
    %v87 = vadd.f32 %v40, %v86
    %88 = vmatmul.f32.gmra.mxu0 %v58
    %v89 = vpop.f32.mrf.mxu0
    %v90 = vadd.f32 %v45, %v89
    %91 = vdwg.mxu0
    %v92 = vmax.f32 %v81, 0.0
    %v93 = vmax.f32 %v84, 0.0
    %v94 = vmax.f32 %v87, 0.0
    %v95 = vmax.f32 %v90, 0.0
    %v96 = vld [vmem:[%s3] sm:$0xff]
    %v97 = vld [vmem:[%s3 + $0x8] sm:$0xff]
    %v98 = vld [vmem:[%s3 + $0x10] sm:$0xff]
    %v99 = vld [vmem:[%s3 + $0x18] sm:$0xff]
    %101 = vset.pattern.permute.xlu0 0
    %102 = vperm.xlu0 %101, %v96
    %v103 = vpop.permute.xlu0 %102
    %106 = vset.pattern.permute.xlu0 0
    %107 = vperm.xlu0 %106, %v97
    %v108 = vpop.permute.xlu0 %107
    %111 = vset.pattern.permute.xlu0 0
    %112 = vperm.xlu0 %111, %v98
    %v113 = vpop.permute.xlu0 %112
    %116 = vset.pattern.permute.xlu0 0
    %117 = vperm.xlu0 %116, %v99
    %v118 = vpop.permute.xlu0 %117
    %v120 = vmul.f32 %v103, %v92
    %v121 = vmul.f32 %v108, %v93
    %v122 = vmul.f32 %v113, %v94
    %v123 = vmul.f32 %v118, %v95
    %vm124 = vcmask 64512
    %v125 = vsel %vm124, %v120, 0.0
    %v126 = vsel %vm124, %v121, 0.0
    %v127 = vadd.f32 %v125, %v126
    %v128 = vsel %vm124, %v122, 0.0
    %v129 = vadd.f32 %v127, %v128
    %v130 = vsel %vm124, %v123, 0.0
    %v131 = vadd.f32 %v129, %v130
    %v132 = vrot.slane %v131, 4
    %v133 = vadd.f32 %v131, %v132
    %v134 = vrot.slane %v133, 2
    %v135 = vadd.f32 %v133, %v134
    %v136 = vrot.slane %v135, 1
    %v137 = vadd.f32 %v135, %v136
    %vm138 = vcmask 57344
    %139 = vst.msk [vmem:[#allocation2] sm:$0x1] %vm138, %v137
    // Predicated region
    $region18: #{tpu_custom_call.1} parent=1 // pred_check
      _
    $region19: #{tpu_custom_call.1} parent=1 // pred_check_branch
      %141 = sbr.rel (0) target = $region21
    $region20: #{tpu_custom_call.1} parent=1 // pred_region
      %143 = vsyncadd [#allocation3], 0
      %s145 = sshll.u32 [#allocation2], 4
      %s146 = int_to_ptr.vmem [resolvable:$true] %s145
      %s147 = sshll.u32 %s4, 4
      %s148 = int_to_ptr.hbm [resolvable:$true] %s147
      %150 = dma.vmem_to_hbm [thread:$0]  %s146, 16, %s148, [#allocation3]
    $region21: #{tpu_custom_call.1} parent=1 // pred_fallthru
      _
    // Predicated region
    $region22: #{tpu_custom_call.1} parent=1 // pred_check
      _
    $region23: #{tpu_custom_call.1} parent=1 // pred_check_branch
      %152 = sbr.rel (0) target = $region25
    $region24: #{tpu_custom_call.1} parent=1 // pred_region
      %154 = dma.done [#allocation3], 16
    $region25: #{tpu_custom_call.1} parent=1 // pred_fallthru
      _
    %155 = vsyncpa [#allocation3], 1

</llo_original>
